<compile_context>
chip_gen: v7x
topology: tpu7x:2x2x1
jax: 0.10.0
libtpu: 0.0.40
codegen_flags: <defaults>
</compile_context>

<pallas_src>
import functools

import jax
import jax.numpy as jnp
from jax.experimental import pallas as pl
from jax.experimental.pallas import tpu as pltpu


def _round_up(x, m):
    return (x + m - 1) // m * m


# ---------------------------------------------------------------------------
# Fused kernel body.
# ---------------------------------------------------------------------------
def _mmtm_quad_kernel(di, dt_pad,
                      tab_ref, i1_ref, i2_ref, i3_ref,
                      wsq_tab_ref, wsq_i1_ref, wsq_i2_ref, wsq_i3_ref, bsq_ref,
                      whead_ref, bhead_ref,
                      out_ref):
    f32 = jnp.float32
    tab = tab_ref[...].astype(f32)       # (TB, dt_pad)   zero-padded lanes
    i1 = i1_ref[...].astype(f32)         # (TB, di)
    i2 = i2_ref[...].astype(f32)
    i3 = i3_ref[...].astype(f32)

    # fc_squeeze(cat([tab, i1, i2, i3], dim=1)) as a sum of row-partitioned
    # matmuls; the weight was split on the host, so no in-kernel slicing.
    ex = jnp.dot(tab, wsq_tab_ref[...], preferred_element_type=f32)
    ex = ex + jnp.dot(i1, wsq_i1_ref[...], preferred_element_type=f32)
    ex = ex + jnp.dot(i2, wsq_i2_ref[...], preferred_element_type=f32)
    ex = ex + jnp.dot(i3, wsq_i3_ref[...], preferred_element_type=f32)
    ex = jnp.maximum(ex + bsq_ref[...], 0.0)            # bias + ReLU

    # Four heads fused into one lane-aligned matmul + one sigmoid pass.
    # Head weight columns are laid out [img1 | img2 | img3 | tab(padded)].
    heads = jax.nn.sigmoid(
        jnp.dot(ex, whead_ref[...], preferred_element_type=f32) + bhead_ref[...])

    o1 = heads[:, 0 * di:1 * di]
    o2 = heads[:, 1 * di:2 * di]
    o3 = heads[:, 2 * di:3 * di]
    tab_out = heads[:, 3 * di:3 * di + dt_pad]

    # Single lane-dense output slab (all offsets are multiples of 128):
    #   [i1*o1 | o1 | i2*o2 | o2 | i2*o3 | o3 | tab*tab_out (padded)]
    out_ref[:, 0 * di:1 * di] = i1 * o1
    out_ref[:, 1 * di:2 * di] = o1
    out_ref[:, 2 * di:3 * di] = i2 * o2
    out_ref[:, 3 * di:4 * di] = o2
    # NOTE: the reference module multiplies img_feat_scale2 by img_out_scale3
    # for this output (kept verbatim to preserve semantics).
    out_ref[:, 4 * di:5 * di] = i2 * o3
    out_ref[:, 5 * di:6 * di] = o3
    out_ref[:, 6 * di:6 * di + dt_pad] = tab * tab_out


# ---------------------------------------------------------------------------
# Wrapper: batch-tiled grid, resident (padded / fused) weights.
# ---------------------------------------------------------------------------
@functools.partial(jax.jit, static_argnames=("tile_b",))
def mmtm_quad_forward(params, tab_feat, img1, img2, img3, tile_b=512):
    B, dim_tab = tab_feat.shape
    dim_img = img1.shape[1]
    di = dim_img
    dim = dim_tab + 3 * dim_img
    dim_out = params["w_squeeze"].shape[1]

    dt_pad = _round_up(dim_tab, 128)          # lane-align the tab slot
    do_pad = _round_up(dim_out, 128)          # 208 -> 256: full vregs / MXU depth
    slab_w = 6 * di + dt_pad                  # coalesced output width

    # Big batch tiles feed the MXU & amortize per-step overhead, but never
    # exceed the (8-padded) batch; padded rows are dropped at the end.
    tile_b = max(8, min(tile_b, _round_up(B, 8)))
    b_pad = _round_up(B, tile_b)
    pad_b = b_pad - B

    tab_p = jnp.pad(tab_feat, ((0, pad_b), (0, dt_pad - dim_tab)))
    i1_p = jnp.pad(img1, ((0, pad_b), (0, 0)))
    i2_p = jnp.pad(img2, ((0, pad_b), (0, 0)))
    i3_p = jnp.pad(img3, ((0, pad_b), (0, 0)))

    # ---- host-side weight prep (tiny; zero padding is mathematically inert) --
    w_sq = jnp.pad(params["w_squeeze"], ((0, 0), (0, do_pad - dim_out)))
    b_sq = jnp.pad(params["b_squeeze"], ((0, 0), (0, do_pad - dim_out)))
    w_sq_tab = jnp.pad(w_sq[:dim_tab], ((0, dt_pad - dim_tab), (0, 0)))
    w_sq_i1 = w_sq[dim_tab:dim_tab + di]
    w_sq_i2 = w_sq[dim_tab + di:dim_tab + 2 * di]
    w_sq_i3 = w_sq[dim_tab + 2 * di:dim_tab + 3 * di]

    w_head = jnp.concatenate(
        [params["w_img1"], params["w_img2"], params["w_img3"],
         jnp.pad(params["w_tab"], ((0, 0), (0, dt_pad - dim_tab)))], axis=1)
    w_head = jnp.pad(w_head, ((0, do_pad - dim_out), (0, 0)))
    b_head = jnp.concatenate(
        [params["b_img1"], params["b_img2"], params["b_img3"],
         jnp.pad(params["b_tab"], ((0, 0), (0, dt_pad - dim_tab)))], axis=1)

    grid = (b_pad // tile_b,)

    def row_spec(d):
        return pl.BlockSpec((tile_b, d), lambda b: (b, 0))

    def resident_spec(shape):
        # Constant index_map -> fetched once, stays resident in VMEM.
        return pl.BlockSpec(shape, lambda b: (0, 0))

    in_specs = [
        row_spec(dt_pad), row_spec(di), row_spec(di), row_spec(di),
        resident_spec((dt_pad, do_pad)),
        resident_spec((di, do_pad)),
        resident_spec((di, do_pad)),
        resident_spec((di, do_pad)),
        resident_spec((1, do_pad)),
        resident_spec((do_pad, 3 * di + dt_pad)),
        resident_spec((1, 3 * di + dt_pad)),
    ]
    out_specs = row_spec(slab_w)
    out_shape = jax.ShapeDtypeStruct((b_pad, slab_w), jnp.float32)

    flops = 2 * b_pad * (dim * dim_out + dim_out * (dim_tab + 3 * dim_img))
    transcendentals = b_pad * (3 * di + dt_pad)
    bytes_accessed = 4 * (b_pad * (dt_pad + 3 * di)            # inputs
                          + b_pad * slab_w                     # output slab
                          + (dt_pad + 3 * di + 1) * do_pad     # squeeze W + b
                          + (do_pad + 1) * (3 * di + dt_pad))  # head W + b

    kernel = functools.partial(_mmtm_quad_kernel, di, dt_pad)

    slab = pl.pallas_call(
        kernel,
        grid=grid,
        out_shape=out_shape,
        in_specs=in_specs,
        out_specs=out_specs,
        compiler_params=pltpu.CompilerParams(
            dimension_semantics=("parallel",),   # batch tiles are independent
            vmem_limit_bytes=64 * 1024 * 1024,   # fits v7x's 64 MiB VMEM
        ),
        cost_estimate=pl.CostEstimate(
            flops=flops,
            transcendentals=transcendentals,
            bytes_accessed=bytes_accessed),
    )(tab_p, i1_p, i2_p, i3_p,
      w_sq_tab, w_sq_i1, w_sq_i2, w_sq_i3, b_sq,
      w_head, b_head)

    slab = slab[:B]
    tab_fused = slab[:, 6 * di:6 * di + dim_tab]
    i1_fused = slab[:, 0 * di:1 * di]
    o1 = slab[:, 1 * di:2 * di]
    i2_fused = slab[:, 2 * di:3 * di]
    o2 = slab[:, 3 * di:4 * di]
    i2xo3 = slab[:, 4 * di:5 * di]
    o3 = slab[:, 5 * di:6 * di]
    return (tab_fused, i1_fused, o1, i2_fused, o2, i2xo3, o3)


# ---------------------------------------------------------------------------
# Pure-JAX reference (correctness check).
# ---------------------------------------------------------------------------
def mmtm_quad_ref(params, tab, i1, i2, i3):
    hi = jax.lax.Precision.HIGHEST
    sq = jnp.concatenate([tab, i1, i2, i3], axis=1)
    ex = jnp.maximum(
        jnp.dot(sq, params["w_squeeze"], precision=hi) + params["b_squeeze"], 0.0)
    tab_out = jax.nn.sigmoid(jnp.dot(ex, params["w_tab"], precision=hi) + params["b_tab"])
    o1 = jax.nn.sigmoid(jnp.dot(ex, params["w_img1"], precision=hi) + params["b_img1"])
    o2 = jax.nn.sigmoid(jnp.dot(ex, params["w_img2"], precision=hi) + params["b_img2"])
    o3 = jax.nn.sigmoid(jnp.dot(ex, params["w_img3"], precision=hi) + params["b_img3"])
    return (tab * tab_out, i1 * o1, o1, i2 * o2, o2, i2 * o3, o3)


# ---------------------------------------------------------------------------
# Deterministic parameter init (mirrors module shapes, not torch RNG).
# ---------------------------------------------------------------------------
def init_params(key, dim_tab, dim_img, ratio=4):
    dim = dim_tab + 3 * dim_img
    dim_out = int(2 * dim / ratio)
    keys = iter(jax.random.split(key, 10))

    def linear(k, fan_in, fan_out):
        bound = 1.0 / (fan_in ** 0.5)
        w = jax.random.uniform(k, (fan_in, fan_out), jnp.float32, -bound, bound)
        b = jnp.zeros((1, fan_out), jnp.float32)
        return w, b

    p = {}
    p["w_squeeze"], p["b_squeeze"] = linear(next(keys), dim, dim_out)
    p["w_tab"], p["b_tab"] = linear(next(keys), dim_out, dim_tab)
    p["w_img1"], p["b_img1"] = linear(next(keys), dim_out, dim_img)
    p["w_img2"], p["b_img2"] = linear(next(keys), dim_out, dim_img)
    p["w_img3"], p["b_img3"] = linear(next(keys), dim_out, dim_img)
    return p


if __name__ == "__main__":
    B, DIM_TAB, DIM_IMG = 2, 32, 128

    key = jax.random.PRNGKey(0)
    k_params, k_t, k_1, k_2, k_3 = jax.random.split(key, 5)
    params = init_params(k_params, DIM_TAB, DIM_IMG)

    tab_feat = jax.random.normal(k_t, (B, DIM_TAB), jnp.float32)
    img1 = jax.random.normal(k_1, (B, DIM_IMG), jnp.float32)
    img2 = jax.random.normal(k_2, (B, DIM_IMG), jnp.float32)
    img3 = jax.random.normal(k_3, (B, DIM_IMG), jnp.float32)

    outs = mmtm_quad_forward(params, tab_feat, img1, img2, img3)
    outs = jax.block_until_ready(outs)

    refs = mmtm_quad_ref(params, tab_feat, img1, img2, img3)
    assert len(outs) == 7
    expected_shapes = [(B, DIM_TAB)] + [(B, DIM_IMG)] * 6
    for o, r, s in zip(outs, refs, expected_shapes):
        assert o.shape == s, (o.shape, s)
        assert jnp.allclose(o, r, atol=2e-4, rtol=2e-4), float(jnp.max(jnp.abs(o - r)))

    print("KERNEL_OK")
</pallas_src>

<mosaic_0001>
module attributes {stable_mosaic.version = 11 : i64} {
  func.func @_mmtm_quad_kernel(%arg0: i32, %arg1: memref<8x128xf32, #tpu.memory_space<vmem>>, %arg2: memref<8x128xf32, #tpu.memory_space<vmem>>, %arg3: memref<8x128xf32, #tpu.memory_space<vmem>>, %arg4: memref<8x128xf32, #tpu.memory_space<vmem>>, %arg5: memref<128x256xf32, #tpu.memory_space<vmem>>, %arg6: memref<128x256xf32, #tpu.memory_space<vmem>>, %arg7: memref<128x256xf32, #tpu.memory_space<vmem>>, %arg8: memref<128x256xf32, #tpu.memory_space<vmem>>, %arg9: memref<1x256xf32, #tpu.memory_space<vmem>>, %arg10: memref<256x512xf32, #tpu.memory_space<vmem>>, %arg11: memref<1x512xf32, #tpu.memory_space<vmem>>, %arg12: memref<8x896xf32, #tpu.memory_space<vmem>>) attributes {dimension_semantics = [#tpu.dimension_semantics<parallel>], iteration_bounds = array<i64: 1>, scalar_prefetch = 0 : i64, scratch_operands = 0 : i64, tpu.core_type = #tpu.core_type<tc>, window_params = [{transform_indices = @transform_0, window_bounds = array<i64: 8, 128>}, {transform_indices = @transform_1, window_bounds = array<i64: 8, 128>}, {transform_indices = @transform_2, window_bounds = array<i64: 8, 128>}, {transform_indices = @transform_3, window_bounds = array<i64: 8, 128>}, {pipeline_mode = #tpu.pipeline_mode<synchronous>, transform_indices = @transform_4, window_bounds = array<i64: 128, 256>}, {pipeline_mode = #tpu.pipeline_mode<synchronous>, transform_indices = @transform_5, window_bounds = array<i64: 128, 256>}, {pipeline_mode = #tpu.pipeline_mode<synchronous>, transform_indices = @transform_6, window_bounds = array<i64: 128, 256>}, {pipeline_mode = #tpu.pipeline_mode<synchronous>, transform_indices = @transform_7, window_bounds = array<i64: 128, 256>}, {pipeline_mode = #tpu.pipeline_mode<synchronous>, transform_indices = @transform_8, window_bounds = array<i64: 1, 256>}, {pipeline_mode = #tpu.pipeline_mode<synchronous>, transform_indices = @transform_9, window_bounds = array<i64: 256, 512>}, {pipeline_mode = #tpu.pipeline_mode<synchronous>, transform_indices = @transform_10, window_bounds = array<i64: 1, 512>}, {transform_indices = @transform_11, window_bounds = array<i64: 8, 896>}]} {
    %c0 = arith.constant 0 : index
    %c0_0 = arith.constant 0 : index
    %0 = vector.load %arg1[%c0, %c0_0] : memref<8x128xf32, #tpu.memory_space<vmem>>, vector<8x128xf32>
    %c0_1 = arith.constant 0 : index
    %c0_2 = arith.constant 0 : index
    %1 = vector.load %arg2[%c0_1, %c0_2] : memref<8x128xf32, #tpu.memory_space<vmem>>, vector<8x128xf32>
    %c0_3 = arith.constant 0 : index
    %c0_4 = arith.constant 0 : index
    %2 = vector.load %arg3[%c0_3, %c0_4] : memref<8x128xf32, #tpu.memory_space<vmem>>, vector<8x128xf32>
    %c0_5 = arith.constant 0 : index
    %c0_6 = arith.constant 0 : index
    %3 = vector.load %arg4[%c0_5, %c0_6] : memref<8x128xf32, #tpu.memory_space<vmem>>, vector<8x128xf32>
    %c0_7 = arith.constant 0 : index
    %c0_8 = arith.constant 0 : index
    %4 = vector.load %arg5[%c0_7, %c0_8] : memref<128x256xf32, #tpu.memory_space<vmem>>, vector<128x256xf32>
    %cst = arith.constant dense<0.000000e+00> : vector<8x256xf32>
    %5 = tpu.matmul %0, %4, %cst {dimension_numbers = #tpu.dot_dimension_numbers<[1], [0], [0], [1], [0, 0, 1, 1], [], []>} : vector<8x128xf32>, vector<128x256xf32>, vector<8x256xf32> -> vector<8x256xf32>
    %c0_9 = arith.constant 0 : index
    %c0_10 = arith.constant 0 : index
    %6 = vector.load %arg6[%c0_9, %c0_10] : memref<128x256xf32, #tpu.memory_space<vmem>>, vector<128x256xf32>
    %cst_11 = arith.constant dense<0.000000e+00> : vector<8x256xf32>
    %7 = tpu.matmul %1, %6, %cst_11 {dimension_numbers = #tpu.dot_dimension_numbers<[1], [0], [0], [1], [0, 0, 1, 1], [], []>} : vector<8x128xf32>, vector<128x256xf32>, vector<8x256xf32> -> vector<8x256xf32>
    %8 = arith.addf %5, %7 : vector<8x256xf32>
    %c0_12 = arith.constant 0 : index
    %c0_13 = arith.constant 0 : index
    %9 = vector.load %arg7[%c0_12, %c0_13] : memref<128x256xf32, #tpu.memory_space<vmem>>, vector<128x256xf32>
    %cst_14 = arith.constant dense<0.000000e+00> : vector<8x256xf32>
    %10 = tpu.matmul %2, %9, %cst_14 {dimension_numbers = #tpu.dot_dimension_numbers<[1], [0], [0], [1], [0, 0, 1, 1], [], []>} : vector<8x128xf32>, vector<128x256xf32>, vector<8x256xf32> -> vector<8x256xf32>
    %11 = arith.addf %8, %10 : vector<8x256xf32>
    %c0_15 = arith.constant 0 : index
    %c0_16 = arith.constant 0 : index
    %12 = vector.load %arg8[%c0_15, %c0_16] : memref<128x256xf32, #tpu.memory_space<vmem>>, vector<128x256xf32>
    %cst_17 = arith.constant dense<0.000000e+00> : vector<8x256xf32>
    %13 = tpu.matmul %3, %12, %cst_17 {dimension_numbers = #tpu.dot_dimension_numbers<[1], [0], [0], [1], [0, 0, 1, 1], [], []>} : vector<8x128xf32>, vector<128x256xf32>, vector<8x256xf32> -> vector<8x256xf32>
    %14 = arith.addf %11, %13 : vector<8x256xf32>
    %c0_18 = arith.constant 0 : index
    %c0_19 = arith.constant 0 : index
    %15 = vector.load %arg9[%c0_18, %c0_19] : memref<1x256xf32, #tpu.memory_space<vmem>>, vector<1x256xf32>
    %16 = vector.broadcast %15 : vector<1x256xf32> to vector<8x256xf32>
    %17 = arith.addf %14, %16 : vector<8x256xf32>
    %cst_20 = arith.constant 0.000000e+00 : f32
    %18 = vector.broadcast %cst_20 : f32 to vector<8x256xf32>
    %19 = arith.maximumf %17, %18 : vector<8x256xf32>
    %c0_21 = arith.constant 0 : index
    %c0_22 = arith.constant 0 : index
    %20 = vector.load %arg10[%c0_21, %c0_22] : memref<256x512xf32, #tpu.memory_space<vmem>>, vector<256x512xf32>
    %cst_23 = arith.constant dense<0.000000e+00> : vector<8x512xf32>
    %21 = tpu.matmul %19, %20, %cst_23 {dimension_numbers = #tpu.dot_dimension_numbers<[1], [0], [0], [1], [0, 0, 1, 1], [], []>} : vector<8x256xf32>, vector<256x512xf32>, vector<8x512xf32> -> vector<8x512xf32>
    %c0_24 = arith.constant 0 : index
    %c0_25 = arith.constant 0 : index
    %22 = vector.load %arg11[%c0_24, %c0_25] : memref<1x512xf32, #tpu.memory_space<vmem>>, vector<1x512xf32>
    %23 = vector.broadcast %22 : vector<1x512xf32> to vector<8x512xf32>
    %24 = arith.addf %21, %23 : vector<8x512xf32>
    %25 = arith.negf %24 : vector<8x512xf32>
    %26 = math.exp %25 : vector<8x512xf32>
    %cst_26 = arith.constant 1.000000e+00 : f32
    %27 = vector.broadcast %cst_26 : f32 to vector<8x512xf32>
    %28 = arith.addf %27, %26 : vector<8x512xf32>
    %29 = arith.divf %27, %28 : vector<8x512xf32>
    %30 = vector.extract_strided_slice %29 {offsets = [0, 0], sizes = [8, 128], strides = [1, 1]} : vector<8x512xf32> to vector<8x128xf32>
    %31 = vector.extract_strided_slice %29 {offsets = [0, 128], sizes = [8, 128], strides = [1, 1]} : vector<8x512xf32> to vector<8x128xf32>
    %32 = vector.extract_strided_slice %29 {offsets = [0, 256], sizes = [8, 128], strides = [1, 1]} : vector<8x512xf32> to vector<8x128xf32>
    %33 = vector.extract_strided_slice %29 {offsets = [0, 384], sizes = [8, 128], strides = [1, 1]} : vector<8x512xf32> to vector<8x128xf32>
    %34 = arith.mulf %1, %30 : vector<8x128xf32>
    %c0_27 = arith.constant 0 : index
    %c0_28 = arith.constant 0 : index
    %35 = vector.load %arg12[%c0_27, %c0_28] : memref<8x896xf32, #tpu.memory_space<vmem>>, vector<8x128xf32>
    tpu.vector_store %arg12[%c0_27, %c0_28], %34 {strides = array<i32>} : memref<8x896xf32, #tpu.memory_space<vmem>>, vector<8x128xf32>,
    %c0_29 = arith.constant 0 : index
    %c128 = arith.constant 128 : index
    %36 = vector.load %arg12[%c0_29, %c128] : memref<8x896xf32, #tpu.memory_space<vmem>>, vector<8x128xf32>
    tpu.vector_store %arg12[%c0_29, %c128], %30 {strides = array<i32>} : memref<8x896xf32, #tpu.memory_space<vmem>>, vector<8x128xf32>,
    %37 = arith.mulf %2, %31 : vector<8x128xf32>
    %c0_30 = arith.constant 0 : index
    %c256 = arith.constant 256 : index
    %38 = vector.load %arg12[%c0_30, %c256] : memref<8x896xf32, #tpu.memory_space<vmem>>, vector<8x128xf32>
    tpu.vector_store %arg12[%c0_30, %c256], %37 {strides = array<i32>} : memref<8x896xf32, #tpu.memory_space<vmem>>, vector<8x128xf32>,
    %c0_31 = arith.constant 0 : index
    %c384 = arith.constant 384 : index
    %39 = vector.load %arg12[%c0_31, %c384] : memref<8x896xf32, #tpu.memory_space<vmem>>, vector<8x128xf32>
    tpu.vector_store %arg12[%c0_31, %c384], %31 {strides = array<i32>} : memref<8x896xf32, #tpu.memory_space<vmem>>, vector<8x128xf32>,
    %40 = arith.mulf %2, %32 : vector<8x128xf32>
    %c0_32 = arith.constant 0 : index
    %c512 = arith.constant 512 : index
    %41 = vector.load %arg12[%c0_32, %c512] : memref<8x896xf32, #tpu.memory_space<vmem>>, vector<8x128xf32>
    tpu.vector_store %arg12[%c0_32, %c512], %40 {strides = array<i32>} : memref<8x896xf32, #tpu.memory_space<vmem>>, vector<8x128xf32>,
    %c0_33 = arith.constant 0 : index
    %c640 = arith.constant 640 : index
    %42 = vector.load %arg12[%c0_33, %c640] : memref<8x896xf32, #tpu.memory_space<vmem>>, vector<8x128xf32>
    tpu.vector_store %arg12[%c0_33, %c640], %32 {strides = array<i32>} : memref<8x896xf32, #tpu.memory_space<vmem>>, vector<8x128xf32>,
    %43 = arith.mulf %0, %33 : vector<8x128xf32>
    %c0_34 = arith.constant 0 : index
    %c768 = arith.constant 768 : index
    %44 = vector.load %arg12[%c0_34, %c768] : memref<8x896xf32, #tpu.memory_space<vmem>>, vector<8x128xf32>
    tpu.vector_store %arg12[%c0_34, %c768], %43 {strides = array<i32>} : memref<8x896xf32, #tpu.memory_space<vmem>>, vector<8x128xf32>,
    return
  }
  func.func @transform_0(%arg0: i32) -> (i32, i32) {
    %c0_i32 = arith.constant 0 : i32
    %c0_i32_0 = arith.constant 0 : i32
    return %arg0, %c0_i32 : i32, i32
  }
  func.func @transform_1(%arg0: i32) -> (i32, i32) {
    %c0_i32 = arith.constant 0 : i32
    %c0_i32_0 = arith.constant 0 : i32
    return %arg0, %c0_i32 : i32, i32
  }
  func.func @transform_2(%arg0: i32) -> (i32, i32) {
    %c0_i32 = arith.constant 0 : i32
    %c0_i32_0 = arith.constant 0 : i32
    return %arg0, %c0_i32 : i32, i32
  }
  func.func @transform_3(%arg0: i32) -> (i32, i32) {
    %c0_i32 = arith.constant 0 : i32
    %c0_i32_0 = arith.constant 0 : i32
    return %arg0, %c0_i32 : i32, i32
  }
  func.func @transform_4(%arg0: i32) -> (i32, i32) {
    %c0_i32 = arith.constant 0 : i32
    %c0_i32_0 = arith.constant 0 : i32
    %c0_i32_1 = arith.constant 0 : i32
    return %c0_i32, %c0_i32_0 : i32, i32
  }
  func.func @transform_5(%arg0: i32) -> (i32, i32) {
    %c0_i32 = arith.constant 0 : i32
    %c0_i32_0 = arith.constant 0 : i32
    %c0_i32_1 = arith.constant 0 : i32
    return %c0_i32, %c0_i32_0 : i32, i32
  }
  func.func @transform_6(%arg0: i32) -> (i32, i32) {
    %c0_i32 = arith.constant 0 : i32
    %c0_i32_0 = arith.constant 0 : i32
    %c0_i32_1 = arith.constant 0 : i32
    return %c0_i32, %c0_i32_0 : i32, i32
  }
  func.func @transform_7(%arg0: i32) -> (i32, i32) {
    %c0_i32 = arith.constant 0 : i32
    %c0_i32_0 = arith.constant 0 : i32
    %c0_i32_1 = arith.constant 0 : i32
    return %c0_i32, %c0_i32_0 : i32, i32
  }
  func.func @transform_8(%arg0: i32) -> (i32, i32) {
    %c0_i32 = arith.constant 0 : i32
    %c0_i32_0 = arith.constant 0 : i32
    %c0_i32_1 = arith.constant 0 : i32
    return %c0_i32, %c0_i32_0 : i32, i32
  }
  func.func @transform_9(%arg0: i32) -> (i32, i32) {
    %c0_i32 = arith.constant 0 : i32
    %c0_i32_0 = arith.constant 0 : i32
    %c0_i32_1 = arith.constant 0 : i32
    return %c0_i32, %c0_i32_0 : i32, i32
  }
  func.func @transform_10(%arg0: i32) -> (i32, i32) {
    %c0_i32 = arith.constant 0 : i32
    %c0_i32_0 = arith.constant 0 : i32
    %c0_i32_1 = arith.constant 0 : i32
    return %c0_i32, %c0_i32_0 : i32, i32
  }
  func.func @transform_11(%arg0: i32) -> (i32, i32) {
    %c0_i32 = arith.constant 0 : i32
    %c0_i32_0 = arith.constant 0 : i32
    return %arg0, %c0_i32 : i32, i32
  }
}

</mosaic_0001>

<llo_original>
// kernel: mmtm_quad_forward.1
$region0: #{mmtm_quad_forward.1}
  #allocation0 [shape = 'u32[]', space=smem, size = 0x4, offset = 0x4, fixed_abs, tag = 'smem constant byte address 0x4 - core index']
  #allocation1 [shape = 'u32[144,128]{1,0:T(1,128)}', space=vmem, size = 0x12000, scoped, tag = 'internal scratch']
  %s0 = inlined_call_operand.hbm [shape: f32[8,128], index: 0, kind: input, shape index: {}]
  %s1 = inlined_call_operand.hbm [shape: f32[8,128], index: 1, kind: input, shape index: {}]
  %s2 = inlined_call_operand.hbm [shape: f32[8,128], index: 2, kind: input, shape index: {}]
  %s3 = inlined_call_operand.hbm [shape: f32[8,128], index: 3, kind: input, shape index: {}]
  %s4 = inlined_call_operand.hbm [shape: f32[128,256], index: 4, kind: input, shape index: {}]
  %s5 = inlined_call_operand.hbm [shape: f32[128,256], index: 5, kind: input, shape index: {}]
  %s6 = inlined_call_operand.hbm [shape: f32[128,256], index: 6, kind: input, shape index: {}]
  %s7 = inlined_call_operand.hbm [shape: f32[128,256], index: 7, kind: input, shape index: {}]
  %s8 = inlined_call_operand.hbm [shape: f32[1,256], index: 8, kind: input, shape index: {}]
  %s9 = inlined_call_operand.hbm [shape: f32[256,512], index: 9, kind: input, shape index: {}]
  %s10 = inlined_call_operand.hbm [shape: f32[1,512], index: 10, kind: input, shape index: {}]
  %s11 = inlined_call_operand.hbm [shape: f32[8,896], index: 11, kind: output, shape index: {}]
  %s12 = sld [smem:[#allocation0]]
  $region98: #{mmtm_quad_forward.1} parent=0
    _
  %s14 = ssub.s32 1, %s12
  %s15 = scalar_select 0, %s14, %s12
  $region1: #{mmtm_quad_forward.1} parent=0
    #allocation2 [shape = 'u8[4096]{0}', space=vmem, size = 0x1000, scoped, tag = 'input window, operand 0, single buffered']
    #allocation3 [shape = 's32[1]{0}', space=sflag, size = 0x4, scoped, tag = 'scoped memory for mmtm_quad_forward.1']
    #allocation4 [shape = 's32[1]{0}', space=sflag, size = 0x4, scoped, tag = 'scoped memory for mmtm_quad_forward.1']
    #allocation5 [shape = 'u8[4096]{0}', space=vmem, size = 0x1000, scoped, tag = 'input window, operand 1, single buffered']
    #allocation6 [shape = 's32[1]{0}', space=sflag, size = 0x4, scoped, tag = 'scoped memory for mmtm_quad_forward.1']
    #allocation7 [shape = 'u8[4096]{0}', space=vmem, size = 0x1000, scoped, tag = 'input window, operand 2, single buffered']
    #allocation8 [shape = 'u8[4096]{0}', space=vmem, size = 0x1000, scoped, tag = 'input window, operand 3, single buffered']
    #allocation9 [shape = 's32[1]{0}', space=sflag, size = 0x4, scoped, tag = 'scoped memory for mmtm_quad_forward.1']
    #allocation10 [shape = 'u8[131072]{0}', space=vmem, size = 0x20000, scoped, tag = 'input window, operand 4, single buffered']
    #allocation11 [shape = 'u8[131072]{0}', space=vmem, size = 0x20000, scoped, tag = 'input window, operand 5, single buffered']
    #allocation12 [shape = 's32[1]{0}', space=sflag, size = 0x4, scoped, tag = 'scoped memory for mmtm_quad_forward.1']
    #allocation13 [shape = 'u8[131072]{0}', space=vmem, size = 0x20000, scoped, tag = 'input window, operand 6, single buffered']
    #allocation14 [shape = 'u8[131072]{0}', space=vmem, size = 0x20000, scoped, tag = 'input window, operand 7, single buffered']
    #allocation15 [shape = 's32[1]{0}', space=sflag, size = 0x4, scoped, tag = 'scoped memory for mmtm_quad_forward.1']
    #allocation16 [shape = 'u8[1024]{0}', space=vmem, size = 0x400, scoped, tag = 'input window, operand 8, single buffered']
    #allocation17 [shape = 'u8[524288]{0}', space=vmem, size = 0x80000, scoped, tag = 'input window, operand 9, single buffered']
    #allocation18 [shape = 's32[1]{0}', space=sflag, size = 0x4, scoped, tag = 'scoped memory for mmtm_quad_forward.1']
    #allocation19 [shape = 'u8[2048]{0}', space=vmem, size = 0x800, scoped, tag = 'input window, operand 10, single buffered']
    #allocation20 [shape = 'u8[28672]{0}', space=vmem, size = 0x7000, scoped, tag = 'output window, operand 0, single buffered']
    %16 = vsyncpa [#allocation3], 0
    %17 = vsyncpa [#allocation6], 0
    %18 = vsyncpa [#allocation9], 0
    %19 = vsyncpa [#allocation12], 0
    %20 = vsyncpa [#allocation15], 0
    %21 = vsyncpa [#allocation18], 0
    %22 = vsyncpa [#allocation4], 0
    // Predicated region
    $region2: #{mmtm_quad_forward.1} parent=1 // pred_check
      _
    $region3: #{mmtm_quad_forward.1} parent=1 // pred_check_branch
      %24 = sbr.rel (0) target = $region5
    $region4: #{mmtm_quad_forward.1} parent=1 // pred_region
      %s26 = ssub.s32 128, 128
      %27 = vsyncadd [#allocation3], %s26
      %s29 = sshll.u32 [#allocation2], 4
      %s30 = int_to_ptr.vmem [resolvable:$true] %s29
      %32 = dma.hbm_to_vmem [thread:$0]  %s0, 128, %s30, [#allocation3]
    $region5: #{mmtm_quad_forward.1} parent=1 // pred_fallthru
      _
    // Predicated region
    $region6: #{mmtm_quad_forward.1} parent=1 // pred_check
      _
    $region7: #{mmtm_quad_forward.1} parent=1 // pred_check_branch
      %34 = sbr.rel (0) target = $region9
    $region8: #{mmtm_quad_forward.1} parent=1 // pred_region
      %s36 = ssub.s32 128, 128
      %37 = vsyncadd [#allocation6], %s36
      %s39 = sshll.u32 [#allocation5], 4
      %s40 = int_to_ptr.vmem [resolvable:$true] %s39
      %42 = dma.hbm_to_vmem [thread:$0]  %s1, 128, %s40, [#allocation6]
    $region9: #{mmtm_quad_forward.1} parent=1 // pred_fallthru
      _
    // Predicated region
    $region10: #{mmtm_quad_forward.1} parent=1 // pred_check
      _
    $region11: #{mmtm_quad_forward.1} parent=1 // pred_check_branch
      %44 = sbr.rel (0) target = $region13
    $region12: #{mmtm_quad_forward.1} parent=1 // pred_region
      %s46 = ssub.s32 128, 128
      %47 = vsyncadd [#allocation6], %s46
      %s49 = sshll.u32 [#allocation7], 4
      %s50 = int_to_ptr.vmem [resolvable:$true] %s49
      %52 = dma.hbm_to_vmem [thread:$0]  %s2, 128, %s50, [#allocation6]
    $region13: #{mmtm_quad_forward.1} parent=1 // pred_fallthru
      _
    // Predicated region
    $region14: #{mmtm_quad_forward.1} parent=1 // pred_check
      _
    $region15: #{mmtm_quad_forward.1} parent=1 // pred_check_branch
      %54 = sbr.rel (0) target = $region17
    $region16: #{mmtm_quad_forward.1} parent=1 // pred_region
      %s56 = ssub.s32 128, 128
      %57 = vsyncadd [#allocation9], %s56
      %s59 = sshll.u32 [#allocation8], 4
      %s60 = int_to_ptr.vmem [resolvable:$true] %s59
      %62 = dma.hbm_to_vmem [thread:$0]  %s3, 128, %s60, [#allocation9]
    $region17: #{mmtm_quad_forward.1} parent=1 // pred_fallthru
      _
    // Predicated region
    $region18: #{mmtm_quad_forward.1} parent=1 // pred_check
      _
    $region19: #{mmtm_quad_forward.1} parent=1 // pred_check_branch
      %64 = sbr.rel (0) target = $region21
    $region20: #{mmtm_quad_forward.1} parent=1 // pred_region
      %s66 = ssub.s32 4096, 4096
      %67 = vsyncadd [#allocation9], %s66
      %s68 = sshll.u32 [#allocation10], 4
      %s69 = int_to_ptr.vmem [resolvable:$true] %s68
      %74 = dma.hbm_to_vmem [thread:$0]  %s4, 4096, %s69, [#allocation9], 256, 256, 16
    $region21: #{mmtm_quad_forward.1} parent=1 // pred_fallthru
      _
    // Predicated region
    $region22: #{mmtm_quad_forward.1} parent=1 // pred_check
      _
    $region23: #{mmtm_quad_forward.1} parent=1 // pred_check_branch
      %76 = sbr.rel (0) target = $region25
    $region24: #{mmtm_quad_forward.1} parent=1 // pred_region
      %s78 = ssub.s32 4096, 4096
      %79 = vsyncadd [#allocation12], %s78
      %s80 = sshll.u32 [#allocation11], 4
      %s81 = int_to_ptr.vmem [resolvable:$true] %s80
      %86 = dma.hbm_to_vmem [thread:$0]  %s5, 4096, %s81, [#allocation12], 256, 256, 16
    $region25: #{mmtm_quad_forward.1} parent=1 // pred_fallthru
      _
    // Predicated region
    $region26: #{mmtm_quad_forward.1} parent=1 // pred_check
      _
    $region27: #{mmtm_quad_forward.1} parent=1 // pred_check_branch
      %88 = sbr.rel (0) target = $region29
    $region28: #{mmtm_quad_forward.1} parent=1 // pred_region
      %s90 = ssub.s32 4096, 4096
      %91 = vsyncadd [#allocation12], %s90
      %s92 = sshll.u32 [#allocation13], 4
      %s93 = int_to_ptr.vmem [resolvable:$true] %s92
      %98 = dma.hbm_to_vmem [thread:$0]  %s6, 4096, %s93, [#allocation12], 256, 256, 16
    $region29: #{mmtm_quad_forward.1} parent=1 // pred_fallthru
      _
    // Predicated region
    $region30: #{mmtm_quad_forward.1} parent=1 // pred_check
      _
    $region31: #{mmtm_quad_forward.1} parent=1 // pred_check_branch
      %100 = sbr.rel (0) target = $region33
    $region32: #{mmtm_quad_forward.1} parent=1 // pred_region
      %s102 = ssub.s32 4096, 4096
      %103 = vsyncadd [#allocation15], %s102
      %s104 = sshll.u32 [#allocation14], 4
      %s105 = int_to_ptr.vmem [resolvable:$true] %s104
      %110 = dma.hbm_to_vmem [thread:$0]  %s7, 4096, %s105, [#allocation15], 256, 256, 16
    $region33: #{mmtm_quad_forward.1} parent=1 // pred_fallthru
      _
    // Predicated region
    $region34: #{mmtm_quad_forward.1} parent=1 // pred_check
      _
    $region35: #{mmtm_quad_forward.1} parent=1 // pred_check_branch
      %112 = sbr.rel (0) target = $region37
    $region36: #{mmtm_quad_forward.1} parent=1 // pred_region
      %s114 = ssub.s32 32, 32
      %115 = vsyncadd [#allocation15], %s114
      %s117 = sshll.u32 [#allocation16], 4
      %s118 = int_to_ptr.vmem [resolvable:$true] %s117
      %120 = dma.hbm_to_vmem [thread:$0]  %s8, 32, %s118, [#allocation15]
    $region37: #{mmtm_quad_forward.1} parent=1 // pred_fallthru
      _
    // Predicated region
    $region38: #{mmtm_quad_forward.1} parent=1 // pred_check
      _
    $region39: #{mmtm_quad_forward.1} parent=1 // pred_check_branch
      %122 = sbr.rel (0) target = $region41
    $region40: #{mmtm_quad_forward.1} parent=1 // pred_region
      %s124 = ssub.s32 16384, 16384
      %125 = vsyncadd [#allocation18], %s124
      %s126 = sshll.u32 [#allocation17], 4
      %s127 = int_to_ptr.vmem [resolvable:$true] %s126
      %132 = dma.hbm_to_vmem [thread:$0]  %s9, 16384, %s127, [#allocation18], 512, 512, 32
    $region41: #{mmtm_quad_forward.1} parent=1 // pred_fallthru
      _
    // Predicated region
    $region42: #{mmtm_quad_forward.1} parent=1 // pred_check
      _
    $region43: #{mmtm_quad_forward.1} parent=1 // pred_check_branch
      %134 = sbr.rel (0) target = $region45
    $region44: #{mmtm_quad_forward.1} parent=1 // pred_region
      %s136 = ssub.s32 64, 64
      %137 = vsyncadd [#allocation18], %s136
      %s139 = sshll.u32 [#allocation19], 4
      %s140 = int_to_ptr.vmem [resolvable:$true] %s139
      %142 = dma.hbm_to_vmem [thread:$0]  %s10, 64, %s140, [#allocation18]
    $region45: #{mmtm_quad_forward.1} parent=1 // pred_fallthru
      _
    // Predicated region
    $region46: #{mmtm_quad_forward.1} parent=1 // pred_check
      _
    $region47: #{mmtm_quad_forward.1} parent=1 // pred_check_branch
      %144 = sbr.rel (0) target = $region49
    $region48: #{mmtm_quad_forward.1} parent=1 // pred_region
      %145 = dma.done [#allocation3], 128
    $region49: #{mmtm_quad_forward.1} parent=1 // pred_fallthru
      _
    // Predicated region
    $region50: #{mmtm_quad_forward.1} parent=1 // pred_check
      _
    $region51: #{mmtm_quad_forward.1} parent=1 // pred_check_branch
      %147 = sbr.rel (0) target = $region53
    $region52: #{mmtm_quad_forward.1} parent=1 // pred_region
      %148 = dma.done [#allocation6], 128
    $region53: #{mmtm_quad_forward.1} parent=1 // pred_fallthru
      _
    // Predicated region
    $region54: #{mmtm_quad_forward.1} parent=1 // pred_check
      _
    $region55: #{mmtm_quad_forward.1} parent=1 // pred_check_branch
      %150 = sbr.rel (0) target = $region57
    $region56: #{mmtm_quad_forward.1} parent=1 // pred_region
      %151 = dma.done [#allocation6], 128
    $region57: #{mmtm_quad_forward.1} parent=1 // pred_fallthru
      _
    // Predicated region
    $region58: #{mmtm_quad_forward.1} parent=1 // pred_check
      _
    $region59: #{mmtm_quad_forward.1} parent=1 // pred_check_branch
      %153 = sbr.rel (0) target = $region61
    $region60: #{mmtm_quad_forward.1} parent=1 // pred_region
      %154 = dma.done [#allocation9], 128
    $region61: #{mmtm_quad_forward.1} parent=1 // pred_fallthru
      _
    // Predicated region
    $region62: #{mmtm_quad_forward.1} parent=1 // pred_check
      _
    $region63: #{mmtm_quad_forward.1} parent=1 // pred_check_branch
      %156 = sbr.rel (0) target = $region65
    $region64: #{mmtm_quad_forward.1} parent=1 // pred_region
      %157 = dma.done [#allocation9], 4096
    $region65: #{mmtm_quad_forward.1} parent=1 // pred_fallthru
      _
    // Predicated region
    $region66: #{mmtm_quad_forward.1} parent=1 // pred_check
      _
    $region67: #{mmtm_quad_forward.1} parent=1 // pred_check_branch
      %159 = sbr.rel (0) target = $region69
    $region68: #{mmtm_quad_forward.1} parent=1 // pred_region
      %160 = dma.done [#allocation12], 4096
    $region69: #{mmtm_quad_forward.1} parent=1 // pred_fallthru
      _
    // Predicated region
    $region70: #{mmtm_quad_forward.1} parent=1 // pred_check
      _
    $region71: #{mmtm_quad_forward.1} parent=1 // pred_check_branch
      %162 = sbr.rel (0) target = $region73
    $region72: #{mmtm_quad_forward.1} parent=1 // pred_region
      %163 = dma.done [#allocation12], 4096
    $region73: #{mmtm_quad_forward.1} parent=1 // pred_fallthru
      _
    // Predicated region
    $region74: #{mmtm_quad_forward.1} parent=1 // pred_check
      _
    $region75: #{mmtm_quad_forward.1} parent=1 // pred_check_branch
      %165 = sbr.rel (0) target = $region77
    $region76: #{mmtm_quad_forward.1} parent=1 // pred_region
      %166 = dma.done [#allocation15], 4096
    $region77: #{mmtm_quad_forward.1} parent=1 // pred_fallthru
      _
    // Predicated region
    $region78: #{mmtm_quad_forward.1} parent=1 // pred_check
      _
    $region79: #{mmtm_quad_forward.1} parent=1 // pred_check_branch
      %168 = sbr.rel (0) target = $region81
    $region80: #{mmtm_quad_forward.1} parent=1 // pred_region
      %169 = dma.done [#allocation15], 32
    $region81: #{mmtm_quad_forward.1} parent=1 // pred_fallthru
      _
    // Predicated region
    $region82: #{mmtm_quad_forward.1} parent=1 // pred_check
      _
    $region83: #{mmtm_quad_forward.1} parent=1 // pred_check_branch
      %171 = sbr.rel (0) target = $region85
    $region84: #{mmtm_quad_forward.1} parent=1 // pred_region
      %172 = dma.done [#allocation18], 16384
    $region85: #{mmtm_quad_forward.1} parent=1 // pred_fallthru
      _
    // Predicated region
    $region86: #{mmtm_quad_forward.1} parent=1 // pred_check
      _
    $region87: #{mmtm_quad_forward.1} parent=1 // pred_check_branch
      %174 = sbr.rel (0) target = $region89
    $region88: #{mmtm_quad_forward.1} parent=1 // pred_region
      %175 = dma.done [#allocation18], 64
    $region89: #{mmtm_quad_forward.1} parent=1 // pred_fallthru
      _
    %v176 = vld [vmem:[#allocation2] sm:$0xff]
    %v177 = vld [vmem:[#allocation5] sm:$0xff]
    %v178 = vld [vmem:[#allocation7] sm:$0xff]
    %v179 = vld [vmem:[#allocation8] sm:$0xff]
    %v180 = vld [vmem:[#allocation10] sm:$0xff]
    %v181 = vld [vmem:[#allocation10 + $0x8] sm:$0xff]
    %v182 = vld [vmem:[#allocation10 + $0x10] sm:$0xff]
    %v183 = vld [vmem:[#allocation10 + $0x18] sm:$0xff]
    %v184 = vld [vmem:[#allocation10 + $0x20] sm:$0xff]
    %v185 = vld [vmem:[#allocation10 + $0x28] sm:$0xff]
    %v186 = vld [vmem:[#allocation10 + $0x30] sm:$0xff]
    %v187 = vld [vmem:[#allocation10 + $0x38] sm:$0xff]
    %v188 = vld [vmem:[#allocation10 + $0x40] sm:$0xff]
    %v189 = vld [vmem:[#allocation10 + $0x48] sm:$0xff]
    %v190 = vld [vmem:[#allocation10 + $0x50] sm:$0xff]
    %v191 = vld [vmem:[#allocation10 + $0x58] sm:$0xff]
    %v192 = vld [vmem:[#allocation10 + $0x60] sm:$0xff]
    %v193 = vld [vmem:[#allocation10 + $0x68] sm:$0xff]
    %v194 = vld [vmem:[#allocation10 + $0x70] sm:$0xff]
    %v195 = vld [vmem:[#allocation10 + $0x78] sm:$0xff]
    %v196 = vld [vmem:[#allocation10 + $0x80] sm:$0xff]
    %v197 = vld [vmem:[#allocation10 + $0x88] sm:$0xff]
    %v198 = vld [vmem:[#allocation10 + $0x90] sm:$0xff]
    %v199 = vld [vmem:[#allocation10 + $0x98] sm:$0xff]
    %v200 = vld [vmem:[#allocation10 + $0xa0] sm:$0xff]
    %v201 = vld [vmem:[#allocation10 + $0xa8] sm:$0xff]
    %v202 = vld [vmem:[#allocation10 + $0xb0] sm:$0xff]
    %v203 = vld [vmem:[#allocation10 + $0xb8] sm:$0xff]
    %v204 = vld [vmem:[#allocation10 + $0xc0] sm:$0xff]
    %v205 = vld [vmem:[#allocation10 + $0xc8] sm:$0xff]
    %v206 = vld [vmem:[#allocation10 + $0xd0] sm:$0xff]
    %v207 = vld [vmem:[#allocation10 + $0xd8] sm:$0xff]
    %v208 = vld [vmem:[#allocation10 + $0xe0] sm:$0xff]
    %v209 = vld [vmem:[#allocation10 + $0xe8] sm:$0xff]
    %v210 = vld [vmem:[#allocation10 + $0xf0] sm:$0xff]
    %v211 = vld [vmem:[#allocation10 + $0xf8] sm:$0xff]
    %v212 = vld [vmem:[#allocation11] sm:$0xff]
    %v213 = vld [vmem:[#allocation11 + $0x8] sm:$0xff]
    %v214 = vld [vmem:[#allocation11 + $0x10] sm:$0xff]
    %v215 = vld [vmem:[#allocation11 + $0x18] sm:$0xff]
    %v216 = vld [vmem:[#allocation11 + $0x20] sm:$0xff]
    %v217 = vld [vmem:[#allocation11 + $0x28] sm:$0xff]
    %v218 = vld [vmem:[#allocation11 + $0x30] sm:$0xff]
    %v219 = vld [vmem:[#allocation11 + $0x38] sm:$0xff]
    %v220 = vld [vmem:[#allocation11 + $0x40] sm:$0xff]
    %v221 = vld [vmem:[#allocation11 + $0x48] sm:$0xff]
    %v222 = vld [vmem:[#allocation11 + $0x50] sm:$0xff]
    %v223 = vld [vmem:[#allocation11 + $0x58] sm:$0xff]
    %v224 = vld [vmem:[#allocation11 + $0x60] sm:$0xff]
    %v225 = vld [vmem:[#allocation11 + $0x68] sm:$0xff]
    %v226 = vld [vmem:[#allocation11 + $0x70] sm:$0xff]
    %v227 = vld [vmem:[#allocation11 + $0x78] sm:$0xff]
    %v228 = vld [vmem:[#allocation11 + $0x80] sm:$0xff]
    %v229 = vld [vmem:[#allocation11 + $0x88] sm:$0xff]
    %v230 = vld [vmem:[#allocation11 + $0x90] sm:$0xff]
    %v231 = vld [vmem:[#allocation11 + $0x98] sm:$0xff]
    %v232 = vld [vmem:[#allocation11 + $0xa0] sm:$0xff]
    %v233 = vld [vmem:[#allocation11 + $0xa8] sm:$0xff]
    %v234 = vld [vmem:[#allocation11 + $0xb0] sm:$0xff]
    %v235 = vld [vmem:[#allocation11 + $0xb8] sm:$0xff]
    %v236 = vld [vmem:[#allocation11 + $0xc0] sm:$0xff]
    %v237 = vld [vmem:[#allocation11 + $0xc8] sm:$0xff]
    %v238 = vld [vmem:[#allocation11 + $0xd0] sm:$0xff]
    %v239 = vld [vmem:[#allocation11 + $0xd8] sm:$0xff]
    %v240 = vld [vmem:[#allocation11 + $0xe0] sm:$0xff]
    %v241 = vld [vmem:[#allocation11 + $0xe8] sm:$0xff]
    %v242 = vld [vmem:[#allocation11 + $0xf0] sm:$0xff]
    %v243 = vld [vmem:[#allocation11 + $0xf8] sm:$0xff]
    %244 = vmatprep.subr.mxu0 %v213
    %245 = vmatpush1.msra.mxu0 %v212
    %246 = vmatprep.subr.mxu0 %v215
    %247 = vmatpush1.msra.mxu0 %v214
    %248 = vmatprep.subr.mxu0 %v217
    %249 = vmatpush1.msra.mxu0 %v216
    %250 = vmatprep.subr.mxu0 %v219
    %251 = vmatpush1.msra.mxu0 %v218
    %252 = vmatprep.subr.mxu0 %v221
    %253 = vmatpush1.msra.mxu0 %v220
    %254 = vmatprep.subr.mxu0 %v223
    %255 = vmatpush1.msra.mxu0 %v222
    %256 = vmatprep.subr.mxu0 %v225
    %257 = vmatpush1.msra.mxu0 %v224
    %258 = vmatprep.subr.mxu0 %v227
    %259 = vmatpush1.msra.mxu0 %v226
    %260 = vmatprep.subr.mxu0 %v229
    %261 = vmatpush1.msra.mxu0 %v228
    %262 = vmatprep.subr.mxu0 %v231
    %263 = vmatpush1.msra.mxu0 %v230
    %264 = vmatprep.subr.mxu0 %v233
    %265 = vmatpush1.msra.mxu0 %v232
    %266 = vmatprep.subr.mxu0 %v235
    %267 = vmatpush1.msra.mxu0 %v234
    %268 = vmatprep.subr.mxu0 %v237
    %269 = vmatpush1.msra.mxu0 %v236
    %270 = vmatprep.subr.mxu0 %v239
    %271 = vmatpush1.msra.mxu0 %v238
    %272 = vmatprep.subr.mxu0 %v241
    %273 = vmatpush1.msra.mxu0 %v240
    %274 = vmatprep.subr.mxu0 %v243
    %275 = vmatpush1.msra.mxu0 %v242
    %276 = vmatprep.subr.mxu0 0.0
    %277 = vmatpush1.msra.mxu0 0.0
    %278 = vmatprep.subr.mxu0 0.0
    %279 = vmatpush1.msra.mxu0 0.0
    %280 = vmatprep.subr.mxu0 0.0
    %281 = vmatpush1.msra.mxu0 0.0
    %282 = vmatprep.subr.mxu0 0.0
    %283 = vmatpush1.msra.mxu0 0.0
    %284 = vmatprep.subr.mxu0 0.0
    %285 = vmatpush1.msra.mxu0 0.0
    %286 = vmatprep.subr.mxu0 0.0
    %287 = vmatpush1.msra.mxu0 0.0
    %288 = vmatprep.subr.mxu0 0.0
    %289 = vmatpush1.msra.mxu0 0.0
    %290 = vmatprep.subr.mxu0 0.0
    %291 = vmatpush1.msra.mxu0 0.0
    %292 = vmatprep.subr.mxu0 0.0
    %293 = vmatpush1.msra.mxu0 0.0
    %294 = vmatprep.subr.mxu0 0.0
    %295 = vmatpush1.msra.mxu0 0.0
    %296 = vmatprep.subr.mxu0 0.0
    %297 = vmatpush1.msra.mxu0 0.0
    %298 = vmatprep.subr.mxu0 0.0
    %299 = vmatpush1.msra.mxu0 0.0
    %300 = vmatprep.subr.mxu0 0.0
    %301 = vmatpush1.msra.mxu0 0.0
    %302 = vmatprep.subr.mxu0 0.0
    %303 = vmatpush1.msra.mxu0 0.0
    %304 = vmatprep.subr.mxu0 0.0
    %305 = vmatpush1.msra.mxu0 0.0
    %306 = vmatprep.subr.mxu0 0.0
    %307 = vmatpush1.msra.mxu0 0.0
    %308 = vmatprep.mubr.f32.mxu0 0.0
    %309 = vmatmul.mubr.f32.gmra.mrb[0].mxu0 %v177
    %v310 = vpop.f32.mrb[0].mxu0
    %v311 = vadd.f32 0.0, %v310
    %v312 = vpop.f32.mrb[0].mxu0
    %v313 = vadd.f32 0.0, %v312
    %314 = vdwg.mxu0
    %315 = vmatprep.subr.mxu0 %v181
    %316 = vmatpush1.msra.mxu0 %v180
    %317 = vmatprep.subr.mxu0 %v183
    %318 = vmatpush1.msra.mxu0 %v182
    %319 = vmatprep.subr.mxu0 %v185
    %320 = vmatpush1.msra.mxu0 %v184
    %321 = vmatprep.subr.mxu0 %v187
    %322 = vmatpush1.msra.mxu0 %v186
    %323 = vmatprep.subr.mxu0 %v189
    %324 = vmatpush1.msra.mxu0 %v188
    %325 = vmatprep.subr.mxu0 %v191
    %326 = vmatpush1.msra.mxu0 %v190
    %327 = vmatprep.subr.mxu0 %v193
    %328 = vmatpush1.msra.mxu0 %v192
    %329 = vmatprep.subr.mxu0 %v195
    %330 = vmatpush1.msra.mxu0 %v194
    %331 = vmatprep.subr.mxu0 %v197
    %332 = vmatpush1.msra.mxu0 %v196
    %333 = vmatprep.subr.mxu0 %v199
    %334 = vmatpush1.msra.mxu0 %v198
    %335 = vmatprep.subr.mxu0 %v201
    %336 = vmatpush1.msra.mxu0 %v200
    %337 = vmatprep.subr.mxu0 %v203
    %338 = vmatpush1.msra.mxu0 %v202
    %339 = vmatprep.subr.mxu0 %v205
    %340 = vmatpush1.msra.mxu0 %v204
    %341 = vmatprep.subr.mxu0 %v207
    %342 = vmatpush1.msra.mxu0 %v206
    %343 = vmatprep.subr.mxu0 %v209
    %344 = vmatpush1.msra.mxu0 %v208
    %345 = vmatprep.subr.mxu0 %v211
    %346 = vmatpush1.msra.mxu0 %v210
    %347 = vmatprep.subr.mxu0 0.0
    %348 = vmatpush1.msra.mxu0 0.0
    %349 = vmatprep.subr.mxu0 0.0
    %350 = vmatpush1.msra.mxu0 0.0
    %351 = vmatprep.subr.mxu0 0.0
    %352 = vmatpush1.msra.mxu0 0.0
    %353 = vmatprep.subr.mxu0 0.0
    %354 = vmatpush1.msra.mxu0 0.0
    %355 = vmatprep.subr.mxu0 0.0
    %356 = vmatpush1.msra.mxu0 0.0
    %357 = vmatprep.subr.mxu0 0.0
    %358 = vmatpush1.msra.mxu0 0.0
    %359 = vmatprep.subr.mxu0 0.0
    %360 = vmatpush1.msra.mxu0 0.0
    %361 = vmatprep.subr.mxu0 0.0
    %362 = vmatpush1.msra.mxu0 0.0
    %363 = vmatprep.subr.mxu0 0.0
    %364 = vmatpush1.msra.mxu0 0.0
    %365 = vmatprep.subr.mxu0 0.0
    %366 = vmatpush1.msra.mxu0 0.0
    %367 = vmatprep.subr.mxu0 0.0
    %368 = vmatpush1.msra.mxu0 0.0
    %369 = vmatprep.subr.mxu0 0.0
    %370 = vmatpush1.msra.mxu0 0.0
    %371 = vmatprep.subr.mxu0 0.0
    %372 = vmatpush1.msra.mxu0 0.0
    %373 = vmatprep.subr.mxu0 0.0
    %374 = vmatpush1.msra.mxu0 0.0
    %375 = vmatprep.subr.mxu0 0.0
    %376 = vmatpush1.msra.mxu0 0.0
    %377 = vmatprep.subr.mxu0 0.0
    %378 = vmatpush1.msra.mxu0 0.0
    %379 = vmatprep.mubr.f32.mxu0 0.0
    %380 = vmatmul.mubr.f32.gmra.mrb[0].mxu0 %v176
    %v381 = vpop.f32.mrb[0].mxu0
    %v382 = vadd.f32 %v311, %v381
    %v383 = vpop.f32.mrb[0].mxu0
    %v384 = vadd.f32 %v313, %v383
    %385 = vdwg.mxu0
    %v386 = vld [vmem:[#allocation13] sm:$0xff]
    %v387 = vld [vmem:[#allocation13 + $0x8] sm:$0xff]
    %v388 = vld [vmem:[#allocation13 + $0x10] sm:$0xff]
    %v389 = vld [vmem:[#allocation13 + $0x18] sm:$0xff]
    %v390 = vld [vmem:[#allocation13 + $0x20] sm:$0xff]
    %v391 = vld [vmem:[#allocation13 + $0x28] sm:$0xff]
    %v392 = vld [vmem:[#allocation13 + $0x30] sm:$0xff]
    %v393 = vld [vmem:[#allocation13 + $0x38] sm:$0xff]
    %v394 = vld [vmem:[#allocation13 + $0x40] sm:$0xff]
    %v395 = vld [vmem:[#allocation13 + $0x48] sm:$0xff]
    %v396 = vld [vmem:[#allocation13 + $0x50] sm:$0xff]
    %v397 = vld [vmem:[#allocation13 + $0x58] sm:$0xff]
    %v398 = vld [vmem:[#allocation13 + $0x60] sm:$0xff]
    %v399 = vld [vmem:[#allocation13 + $0x68] sm:$0xff]
    %v400 = vld [vmem:[#allocation13 + $0x70] sm:$0xff]
    %v401 = vld [vmem:[#allocation13 + $0x78] sm:$0xff]
    %v402 = vld [vmem:[#allocation13 + $0x80] sm:$0xff]
    %v403 = vld [vmem:[#allocation13 + $0x88] sm:$0xff]
    %v404 = vld [vmem:[#allocation13 + $0x90] sm:$0xff]
    %v405 = vld [vmem:[#allocation13 + $0x98] sm:$0xff]
    %v406 = vld [vmem:[#allocation13 + $0xa0] sm:$0xff]
    %v407 = vld [vmem:[#allocation13 + $0xa8] sm:$0xff]
    %v408 = vld [vmem:[#allocation13 + $0xb0] sm:$0xff]
    %v409 = vld [vmem:[#allocation13 + $0xb8] sm:$0xff]
    %v410 = vld [vmem:[#allocation13 + $0xc0] sm:$0xff]
    %v411 = vld [vmem:[#allocation13 + $0xc8] sm:$0xff]
    %v412 = vld [vmem:[#allocation13 + $0xd0] sm:$0xff]
    %v413 = vld [vmem:[#allocation13 + $0xd8] sm:$0xff]
    %v414 = vld [vmem:[#allocation13 + $0xe0] sm:$0xff]
    %v415 = vld [vmem:[#allocation13 + $0xe8] sm:$0xff]
    %v416 = vld [vmem:[#allocation13 + $0xf0] sm:$0xff]
    %v417 = vld [vmem:[#allocation13 + $0xf8] sm:$0xff]
    %418 = vmatprep.subr.mxu0 %v387
    %419 = vmatpush1.msra.mxu0 %v386
    %420 = vmatprep.subr.mxu0 %v389
    %421 = vmatpush1.msra.mxu0 %v388
    %422 = vmatprep.subr.mxu0 %v391
    %423 = vmatpush1.msra.mxu0 %v390
    %424 = vmatprep.subr.mxu0 %v393
    %425 = vmatpush1.msra.mxu0 %v392
    %426 = vmatprep.subr.mxu0 %v395
    %427 = vmatpush1.msra.mxu0 %v394
    %428 = vmatprep.subr.mxu0 %v397
    %429 = vmatpush1.msra.mxu0 %v396
    %430 = vmatprep.subr.mxu0 %v399
    %431 = vmatpush1.msra.mxu0 %v398
    %432 = vmatprep.subr.mxu0 %v401
    %433 = vmatpush1.msra.mxu0 %v400
    %434 = vmatprep.subr.mxu0 %v403
    %435 = vmatpush1.msra.mxu0 %v402
    %436 = vmatprep.subr.mxu0 %v405
    %437 = vmatpush1.msra.mxu0 %v404
    %438 = vmatprep.subr.mxu0 %v407
    %439 = vmatpush1.msra.mxu0 %v406
    %440 = vmatprep.subr.mxu0 %v409
    %441 = vmatpush1.msra.mxu0 %v408
    %442 = vmatprep.subr.mxu0 %v411
    %443 = vmatpush1.msra.mxu0 %v410
    %444 = vmatprep.subr.mxu0 %v413
    %445 = vmatpush1.msra.mxu0 %v412
    %446 = vmatprep.subr.mxu0 %v415
    %447 = vmatpush1.msra.mxu0 %v414
    %448 = vmatprep.subr.mxu0 %v417
    %449 = vmatpush1.msra.mxu0 %v416
    %450 = vmatprep.subr.mxu0 0.0
    %451 = vmatpush1.msra.mxu0 0.0
    %452 = vmatprep.subr.mxu0 0.0
    %453 = vmatpush1.msra.mxu0 0.0
    %454 = vmatprep.subr.mxu0 0.0
    %455 = vmatpush1.msra.mxu0 0.0
    %456 = vmatprep.subr.mxu0 0.0
    %457 = vmatpush1.msra.mxu0 0.0
    %458 = vmatprep.subr.mxu0 0.0
    %459 = vmatpush1.msra.mxu0 0.0
    %460 = vmatprep.subr.mxu0 0.0
    %461 = vmatpush1.msra.mxu0 0.0
    %462 = vmatprep.subr.mxu0 0.0
    %463 = vmatpush1.msra.mxu0 0.0
    %464 = vmatprep.subr.mxu0 0.0
    %465 = vmatpush1.msra.mxu0 0.0
    %466 = vmatprep.subr.mxu0 0.0
    %467 = vmatpush1.msra.mxu0 0.0
    %468 = vmatprep.subr.mxu0 0.0
    %469 = vmatpush1.msra.mxu0 0.0
    %470 = vmatprep.subr.mxu0 0.0
    %471 = vmatpush1.msra.mxu0 0.0
    %472 = vmatprep.subr.mxu0 0.0
    %473 = vmatpush1.msra.mxu0 0.0
    %474 = vmatprep.subr.mxu0 0.0
    %475 = vmatpush1.msra.mxu0 0.0
    %476 = vmatprep.subr.mxu0 0.0
    %477 = vmatpush1.msra.mxu0 0.0
    %478 = vmatprep.subr.mxu0 0.0
    %479 = vmatpush1.msra.mxu0 0.0
    %480 = vmatprep.subr.mxu0 0.0
    %481 = vmatpush1.msra.mxu0 0.0
    %482 = vmatprep.mubr.f32.mxu0 0.0
    %483 = vmatmul.mubr.f32.gmra.mrb[0].mxu0 %v178
    %v484 = vpop.f32.mrb[0].mxu0
    %v485 = vadd.f32 0.0, %v484
    %v486 = vpop.f32.mrb[0].mxu0
    %v487 = vadd.f32 0.0, %v486
    %488 = vdwg.mxu0
    %v489 = vadd.f32 %v382, %v485
    %v490 = vadd.f32 %v384, %v487
    %v491 = vld [vmem:[#allocation14] sm:$0xff]
    %v492 = vld [vmem:[#allocation14 + $0x8] sm:$0xff]
    %v493 = vld [vmem:[#allocation14 + $0x10] sm:$0xff]
    %v494 = vld [vmem:[#allocation14 + $0x18] sm:$0xff]
    %v495 = vld [vmem:[#allocation14 + $0x20] sm:$0xff]
    %v496 = vld [vmem:[#allocation14 + $0x28] sm:$0xff]
    %v497 = vld [vmem:[#allocation14 + $0x30] sm:$0xff]
    %v498 = vld [vmem:[#allocation14 + $0x38] sm:$0xff]
    %v499 = vld [vmem:[#allocation14 + $0x40] sm:$0xff]
    %v500 = vld [vmem:[#allocation14 + $0x48] sm:$0xff]
    %v501 = vld [vmem:[#allocation14 + $0x50] sm:$0xff]
    %v502 = vld [vmem:[#allocation14 + $0x58] sm:$0xff]
    %v503 = vld [vmem:[#allocation14 + $0x60] sm:$0xff]
    %v504 = vld [vmem:[#allocation14 + $0x68] sm:$0xff]
    %v505 = vld [vmem:[#allocation14 + $0x70] sm:$0xff]
    %v506 = vld [vmem:[#allocation14 + $0x78] sm:$0xff]
    %v507 = vld [vmem:[#allocation14 + $0x80] sm:$0xff]
    %v508 = vld [vmem:[#allocation14 + $0x88] sm:$0xff]
    %v509 = vld [vmem:[#allocation14 + $0x90] sm:$0xff]
    %v510 = vld [vmem:[#allocation14 + $0x98] sm:$0xff]
    %v511 = vld [vmem:[#allocation14 + $0xa0] sm:$0xff]
    %v512 = vld [vmem:[#allocation14 + $0xa8] sm:$0xff]
    %v513 = vld [vmem:[#allocation14 + $0xb0] sm:$0xff]
    %v514 = vld [vmem:[#allocation14 + $0xb8] sm:$0xff]
    %v515 = vld [vmem:[#allocation14 + $0xc0] sm:$0xff]
    %v516 = vld [vmem:[#allocation14 + $0xc8] sm:$0xff]
    %v517 = vld [vmem:[#allocation14 + $0xd0] sm:$0xff]
    %v518 = vld [vmem:[#allocation14 + $0xd8] sm:$0xff]
    %v519 = vld [vmem:[#allocation14 + $0xe0] sm:$0xff]
    %v520 = vld [vmem:[#allocation14 + $0xe8] sm:$0xff]
    %v521 = vld [vmem:[#allocation14 + $0xf0] sm:$0xff]
    %v522 = vld [vmem:[#allocation14 + $0xf8] sm:$0xff]
    %523 = vmatprep.subr.mxu0 %v492
    %524 = vmatpush1.msra.mxu0 %v491
    %525 = vmatprep.subr.mxu0 %v494
    %526 = vmatpush1.msra.mxu0 %v493
    %527 = vmatprep.subr.mxu0 %v496
    %528 = vmatpush1.msra.mxu0 %v495
    %529 = vmatprep.subr.mxu0 %v498
    %530 = vmatpush1.msra.mxu0 %v497
    %531 = vmatprep.subr.mxu0 %v500
    %532 = vmatpush1.msra.mxu0 %v499
    %533 = vmatprep.subr.mxu0 %v502
    %534 = vmatpush1.msra.mxu0 %v501
    %535 = vmatprep.subr.mxu0 %v504
    %536 = vmatpush1.msra.mxu0 %v503
    %537 = vmatprep.subr.mxu0 %v506
    %538 = vmatpush1.msra.mxu0 %v505
    %539 = vmatprep.subr.mxu0 %v508
    %540 = vmatpush1.msra.mxu0 %v507
    %541 = vmatprep.subr.mxu0 %v510
    %542 = vmatpush1.msra.mxu0 %v509
    %543 = vmatprep.subr.mxu0 %v512
    %544 = vmatpush1.msra.mxu0 %v511
    %545 = vmatprep.subr.mxu0 %v514
    %546 = vmatpush1.msra.mxu0 %v513
    %547 = vmatprep.subr.mxu0 %v516
    %548 = vmatpush1.msra.mxu0 %v515
    %549 = vmatprep.subr.mxu0 %v518
    %550 = vmatpush1.msra.mxu0 %v517
    %551 = vmatprep.subr.mxu0 %v520
    %552 = vmatpush1.msra.mxu0 %v519
    %553 = vmatprep.subr.mxu0 %v522
    %554 = vmatpush1.msra.mxu0 %v521
    %555 = vmatprep.subr.mxu0 0.0
    %556 = vmatpush1.msra.mxu0 0.0
    %557 = vmatprep.subr.mxu0 0.0
    %558 = vmatpush1.msra.mxu0 0.0
    %559 = vmatprep.subr.mxu0 0.0
    %560 = vmatpush1.msra.mxu0 0.0
    %561 = vmatprep.subr.mxu0 0.0
    %562 = vmatpush1.msra.mxu0 0.0
    %563 = vmatprep.subr.mxu0 0.0
    %564 = vmatpush1.msra.mxu0 0.0
    %565 = vmatprep.subr.mxu0 0.0
    %566 = vmatpush1.msra.mxu0 0.0
    %567 = vmatprep.subr.mxu0 0.0
    %568 = vmatpush1.msra.mxu0 0.0
    %569 = vmatprep.subr.mxu0 0.0
    %570 = vmatpush1.msra.mxu0 0.0
    %571 = vmatprep.subr.mxu0 0.0
    %572 = vmatpush1.msra.mxu0 0.0
    %573 = vmatprep.subr.mxu0 0.0
    %574 = vmatpush1.msra.mxu0 0.0
    %575 = vmatprep.subr.mxu0 0.0
    %576 = vmatpush1.msra.mxu0 0.0
    %577 = vmatprep.subr.mxu0 0.0
    %578 = vmatpush1.msra.mxu0 0.0
    %579 = vmatprep.subr.mxu0 0.0
    %580 = vmatpush1.msra.mxu0 0.0
    %581 = vmatprep.subr.mxu0 0.0
    %582 = vmatpush1.msra.mxu0 0.0
    %583 = vmatprep.subr.mxu0 0.0
    %584 = vmatpush1.msra.mxu0 0.0
    %585 = vmatprep.subr.mxu0 0.0
    %586 = vmatpush1.msra.mxu0 0.0
    %587 = vmatprep.mubr.f32.mxu0 0.0
    %588 = vmatmul.mubr.f32.gmra.mrb[0].mxu0 %v179
    %v589 = vpop.f32.mrb[0].mxu0
    %v590 = vadd.f32 0.0, %v589
    %v591 = vpop.f32.mrb[0].mxu0
    %v592 = vadd.f32 0.0, %v591
    %593 = vdwg.mxu0
    %v594 = vadd.f32 %v489, %v590
    %v595 = vadd.f32 %v490, %v592
    %v596 = vld [vmem:[#allocation16] sm:$0x3]
    %v598 = vlaneseq
    %v599 = vshrl.u32 %v598, 7
    %v600 = vsub.s32 0, %v599
    %v601 = vrot.slane %v596, %v600
    %v602 = vlaneseq
    %v603 = vshrl.u32 %v602, 7
    %v604 = vsub.s32 1, %v603
    %v605 = vrot.slane %v596, %v604
    %v608 = vadd.f32 %v594, %v601
    %v609 = vadd.f32 %v595, %v605
    %v610 = vmax.f32 %v608, 0.0
    %v611 = vmax.f32 %v609, 0.0
    %v612 = vld [vmem:[#allocation17] sm:$0xff]
    %v613 = vld [vmem:[#allocation17 + $0x8] sm:$0xff]
    %v614 = vld [vmem:[#allocation17 + $0x10] sm:$0xff]
    %v615 = vld [vmem:[#allocation17 + $0x18] sm:$0xff]
    %v616 = vld [vmem:[#allocation17 + $0x20] sm:$0xff]
    %v617 = vld [vmem:[#allocation17 + $0x28] sm:$0xff]
    %v618 = vld [vmem:[#allocation17 + $0x30] sm:$0xff]
    %v619 = vld [vmem:[#allocation17 + $0x38] sm:$0xff]
    %v620 = vld [vmem:[#allocation17 + $0x40] sm:$0xff]
    %v621 = vld [vmem:[#allocation17 + $0x48] sm:$0xff]
    %v622 = vld [vmem:[#allocation17 + $0x50] sm:$0xff]
    %v623 = vld [vmem:[#allocation17 + $0x58] sm:$0xff]
    %v624 = vld [vmem:[#allocation17 + $0x60] sm:$0xff]
    %v625 = vld [vmem:[#allocation17 + $0x68] sm:$0xff]
    %v626 = vld [vmem:[#allocation17 + $0x70] sm:$0xff]
    %v627 = vld [vmem:[#allocation17 + $0x78] sm:$0xff]
    %v628 = vld [vmem:[#allocation17 + $0x80] sm:$0xff]
    %v629 = vld [vmem:[#allocation17 + $0x88] sm:$0xff]
    %v630 = vld [vmem:[#allocation17 + $0x90] sm:$0xff]
    %v631 = vld [vmem:[#allocation17 + $0x98] sm:$0xff]
    %v632 = vld [vmem:[#allocation17 + $0xa0] sm:$0xff]
    %v633 = vld [vmem:[#allocation17 + $0xa8] sm:$0xff]
    %v634 = vld [vmem:[#allocation17 + $0xb0] sm:$0xff]
    %v635 = vld [vmem:[#allocation17 + $0xb8] sm:$0xff]
    %v636 = vld [vmem:[#allocation17 + $0xc0] sm:$0xff]
    %v637 = vld [vmem:[#allocation17 + $0xc8] sm:$0xff]
    %v638 = vld [vmem:[#allocation17 + $0xd0] sm:$0xff]
    %v639 = vld [vmem:[#allocation17 + $0xd8] sm:$0xff]
    %v640 = vld [vmem:[#allocation17 + $0xe0] sm:$0xff]
    %v641 = vld [vmem:[#allocation17 + $0xe8] sm:$0xff]
    %v642 = vld [vmem:[#allocation17 + $0xf0] sm:$0xff]
    %v643 = vld [vmem:[#allocation17 + $0xf8] sm:$0xff]
    %v644 = vld [vmem:[#allocation17 + $0x100] sm:$0xff]
    %v645 = vld [vmem:[#allocation17 + $0x108] sm:$0xff]
    %v646 = vld [vmem:[#allocation17 + $0x110] sm:$0xff]
    %v647 = vld [vmem:[#allocation17 + $0x118] sm:$0xff]
    %v648 = vld [vmem:[#allocation17 + $0x120] sm:$0xff]
    %v649 = vld [vmem:[#allocation17 + $0x128] sm:$0xff]
    %v650 = vld [vmem:[#allocation17 + $0x130] sm:$0xff]
    %v651 = vld [vmem:[#allocation17 + $0x138] sm:$0xff]
    %v652 = vld [vmem:[#allocation17 + $0x140] sm:$0xff]
    %v653 = vld [vmem:[#allocation17 + $0x148] sm:$0xff]
    %v654 = vld [vmem:[#allocation17 + $0x150] sm:$0xff]
    %v655 = vld [vmem:[#allocation17 + $0x158] sm:$0xff]
    %v656 = vld [vmem:[#allocation17 + $0x160] sm:$0xff]
    %v657 = vld [vmem:[#allocation17 + $0x168] sm:$0xff]
    %v658 = vld [vmem:[#allocation17 + $0x170] sm:$0xff]
    %v659 = vld [vmem:[#allocation17 + $0x178] sm:$0xff]
    %v660 = vld [vmem:[#allocation17 + $0x180] sm:$0xff]
    %v661 = vld [vmem:[#allocation17 + $0x188] sm:$0xff]
    %v662 = vld [vmem:[#allocation17 + $0x190] sm:$0xff]
    %v663 = vld [vmem:[#allocation17 + $0x198] sm:$0xff]
    %v664 = vld [vmem:[#allocation17 + $0x1a0] sm:$0xff]
    %v665 = vld [vmem:[#allocation17 + $0x1a8] sm:$0xff]
    %v666 = vld [vmem:[#allocation17 + $0x1b0] sm:$0xff]
    %v667 = vld [vmem:[#allocation17 + $0x1b8] sm:$0xff]
    %v668 = vld [vmem:[#allocation17 + $0x1c0] sm:$0xff]
    %v669 = vld [vmem:[#allocation17 + $0x1c8] sm:$0xff]
    %v670 = vld [vmem:[#allocation17 + $0x1d0] sm:$0xff]
    %v671 = vld [vmem:[#allocation17 + $0x1d8] sm:$0xff]
    %v672 = vld [vmem:[#allocation17 + $0x1e0] sm:$0xff]
    %v673 = vld [vmem:[#allocation17 + $0x1e8] sm:$0xff]
    %v674 = vld [vmem:[#allocation17 + $0x1f0] sm:$0xff]
    %v675 = vld [vmem:[#allocation17 + $0x1f8] sm:$0xff]
    %v676 = vld [vmem:[#allocation17 + $0x200] sm:$0xff]
    %v677 = vld [vmem:[#allocation17 + $0x208] sm:$0xff]
    %v678 = vld [vmem:[#allocation17 + $0x210] sm:$0xff]
    %v679 = vld [vmem:[#allocation17 + $0x218] sm:$0xff]
    %v680 = vld [vmem:[#allocation17 + $0x220] sm:$0xff]
    %v681 = vld [vmem:[#allocation17 + $0x228] sm:$0xff]
    %v682 = vld [vmem:[#allocation17 + $0x230] sm:$0xff]
    %v683 = vld [vmem:[#allocation17 + $0x238] sm:$0xff]
    %v684 = vld [vmem:[#allocation17 + $0x240] sm:$0xff]
    %v685 = vld [vmem:[#allocation17 + $0x248] sm:$0xff]
    %v686 = vld [vmem:[#allocation17 + $0x250] sm:$0xff]
    %v687 = vld [vmem:[#allocation17 + $0x258] sm:$0xff]
    %v688 = vld [vmem:[#allocation17 + $0x260] sm:$0xff]
    %v689 = vld [vmem:[#allocation17 + $0x268] sm:$0xff]
    %v690 = vld [vmem:[#allocation17 + $0x270] sm:$0xff]
    %v691 = vld [vmem:[#allocation17 + $0x278] sm:$0xff]
    %v692 = vld [vmem:[#allocation17 + $0x280] sm:$0xff]
    %v693 = vld [vmem:[#allocation17 + $0x288] sm:$0xff]
    %v694 = vld [vmem:[#allocation17 + $0x290] sm:$0xff]
    %v695 = vld [vmem:[#allocation17 + $0x298] sm:$0xff]
    %v696 = vld [vmem:[#allocation17 + $0x2a0] sm:$0xff]
    %v697 = vld [vmem:[#allocation17 + $0x2a8] sm:$0xff]
    %v698 = vld [vmem:[#allocation17 + $0x2b0] sm:$0xff]
    %v699 = vld [vmem:[#allocation17 + $0x2b8] sm:$0xff]
    %v700 = vld [vmem:[#allocation17 + $0x2c0] sm:$0xff]
    %v701 = vld [vmem:[#allocation17 + $0x2c8] sm:$0xff]
    %v702 = vld [vmem:[#allocation17 + $0x2d0] sm:$0xff]
    %v703 = vld [vmem:[#allocation17 + $0x2d8] sm:$0xff]
    %v704 = vld [vmem:[#allocation17 + $0x2e0] sm:$0xff]
    %v705 = vld [vmem:[#allocation17 + $0x2e8] sm:$0xff]
    %v706 = vld [vmem:[#allocation17 + $0x2f0] sm:$0xff]
    %v707 = vld [vmem:[#allocation17 + $0x2f8] sm:$0xff]
    %v708 = vld [vmem:[#allocation17 + $0x300] sm:$0xff]
    %v709 = vld [vmem:[#allocation17 + $0x308] sm:$0xff]
    %v710 = vld [vmem:[#allocation17 + $0x310] sm:$0xff]
    %v711 = vld [vmem:[#allocation17 + $0x318] sm:$0xff]
    %v712 = vld [vmem:[#allocation17 + $0x320] sm:$0xff]
    %v713 = vld [vmem:[#allocation17 + $0x328] sm:$0xff]
    %v714 = vld [vmem:[#allocation17 + $0x330] sm:$0xff]
    %v715 = vld [vmem:[#allocation17 + $0x338] sm:$0xff]
    %v716 = vld [vmem:[#allocation17 + $0x340] sm:$0xff]
    %v717 = vld [vmem:[#allocation17 + $0x348] sm:$0xff]
    %v718 = vld [vmem:[#allocation17 + $0x350] sm:$0xff]
    %v719 = vld [vmem:[#allocation17 + $0x358] sm:$0xff]
    %v720 = vld [vmem:[#allocation17 + $0x360] sm:$0xff]
    %v721 = vld [vmem:[#allocation17 + $0x368] sm:$0xff]
    %v722 = vld [vmem:[#allocation17 + $0x370] sm:$0xff]
    %v723 = vld [vmem:[#allocation17 + $0x378] sm:$0xff]
    %v724 = vld [vmem:[#allocation17 + $0x380] sm:$0xff]
    %v725 = vld [vmem:[#allocation17 + $0x388] sm:$0xff]
    %v726 = vld [vmem:[#allocation17 + $0x390] sm:$0xff]
    %v727 = vld [vmem:[#allocation17 + $0x398] sm:$0xff]
    %v728 = vld [vmem:[#allocation17 + $0x3a0] sm:$0xff]
    %v729 = vld [vmem:[#allocation17 + $0x3a8] sm:$0xff]
    %v730 = vld [vmem:[#allocation17 + $0x3b0] sm:$0xff]
    %v731 = vld [vmem:[#allocation17 + $0x3b8] sm:$0xff]
    %v732 = vld [vmem:[#allocation17 + $0x3c0] sm:$0xff]
    %v733 = vld [vmem:[#allocation17 + $0x3c8] sm:$0xff]
    %v734 = vld [vmem:[#allocation17 + $0x3d0] sm:$0xff]
    %v735 = vld [vmem:[#allocation17 + $0x3d8] sm:$0xff]
    %v736 = vld [vmem:[#allocation17 + $0x3e0] sm:$0xff]
    %v737 = vld [vmem:[#allocation17 + $0x3e8] sm:$0xff]
    %v738 = vld [vmem:[#allocation17 + $0x3f0] sm:$0xff]
    %v739 = vld [vmem:[#allocation17 + $0x3f8] sm:$0xff]
    %v740 = vld [vmem:[#allocation19] sm:$0xf]
    %v742 = vlaneseq
    %v743 = vshrl.u32 %v742, 7
    %v744 = vsub.s32 0, %v743
    %v745 = vrot.slane %v740, %v744
    %v746 = vlaneseq
    %v747 = vshrl.u32 %v746, 7
    %v748 = vsub.s32 1, %v747
    %v749 = vrot.slane %v740, %v748
    %v750 = vlaneseq
    %v751 = vshrl.u32 %v750, 7
    %v752 = vsub.s32 2, %v751
    %v753 = vrot.slane %v740, %v752
    %v754 = vlaneseq
    %v755 = vshrl.u32 %v754, 7
    %v756 = vsub.s32 3, %v755
    %v757 = vrot.slane %v740, %v756
    %762 = vmatprep.subr.mxu0 %v613
    %763 = vmatpush1.msra.mxu0 %v612
    %764 = vmatprep.subr.mxu0 %v617
    %765 = vmatpush1.msra.mxu0 %v616
    %766 = vmatprep.subr.mxu0 %v621
    %767 = vmatpush1.msra.mxu0 %v620
    %768 = vmatprep.subr.mxu0 %v625
    %769 = vmatpush1.msra.mxu0 %v624
    %770 = vmatprep.subr.mxu0 %v629
    %771 = vmatpush1.msra.mxu0 %v628
    %772 = vmatprep.subr.mxu0 %v633
    %773 = vmatpush1.msra.mxu0 %v632
    %774 = vmatprep.subr.mxu0 %v637
    %775 = vmatpush1.msra.mxu0 %v636
    %776 = vmatprep.subr.mxu0 %v641
    %777 = vmatpush1.msra.mxu0 %v640
    %778 = vmatprep.subr.mxu0 %v645
    %779 = vmatpush1.msra.mxu0 %v644
    %780 = vmatprep.subr.mxu0 %v649
    %781 = vmatpush1.msra.mxu0 %v648
    %782 = vmatprep.subr.mxu0 %v653
    %783 = vmatpush1.msra.mxu0 %v652
    %784 = vmatprep.subr.mxu0 %v657
    %785 = vmatpush1.msra.mxu0 %v656
    %786 = vmatprep.subr.mxu0 %v661
    %787 = vmatpush1.msra.mxu0 %v660
    %788 = vmatprep.subr.mxu0 %v665
    %789 = vmatpush1.msra.mxu0 %v664
    %790 = vmatprep.subr.mxu0 %v669
    %791 = vmatpush1.msra.mxu0 %v668
    %792 = vmatprep.subr.mxu0 %v673
    %793 = vmatpush1.msra.mxu0 %v672
    %794 = vmatprep.subr.mxu0 %v677
    %795 = vmatpush1.msra.mxu0 %v676
    %796 = vmatprep.subr.mxu0 %v681
    %797 = vmatpush1.msra.mxu0 %v680
    %798 = vmatprep.subr.mxu0 %v685
    %799 = vmatpush1.msra.mxu0 %v684
    %800 = vmatprep.subr.mxu0 %v689
    %801 = vmatpush1.msra.mxu0 %v688
    %802 = vmatprep.subr.mxu0 %v693
    %803 = vmatpush1.msra.mxu0 %v692
    %804 = vmatprep.subr.mxu0 %v697
    %805 = vmatpush1.msra.mxu0 %v696
    %806 = vmatprep.subr.mxu0 %v701
    %807 = vmatpush1.msra.mxu0 %v700
    %808 = vmatprep.subr.mxu0 %v705
    %809 = vmatpush1.msra.mxu0 %v704
    %810 = vmatprep.subr.mxu0 %v709
    %811 = vmatpush1.msra.mxu0 %v708
    %812 = vmatprep.subr.mxu0 %v713
    %813 = vmatpush1.msra.mxu0 %v712
    %814 = vmatprep.subr.mxu0 %v717
    %815 = vmatpush1.msra.mxu0 %v716
    %816 = vmatprep.subr.mxu0 %v721
    %817 = vmatpush1.msra.mxu0 %v720
    %818 = vmatprep.subr.mxu0 %v725
    %819 = vmatpush1.msra.mxu0 %v724
    %820 = vmatprep.subr.mxu0 %v729
    %821 = vmatpush1.msra.mxu0 %v728
    %822 = vmatprep.subr.mxu0 %v733
    %823 = vmatpush1.msra.mxu0 %v732
    %824 = vmatprep.subr.mxu0 %v737
    %825 = vmatpush1.msra.mxu0 %v736
    %826 = vmatprep.mubr.f32.mxu0 %v611
    %827 = vmatmul.mubr.f32.gmra.mrb[0].mxu0 %v610
    %v828 = vpop.f32.mrb[0].mxu0
    %v829 = vadd.f32 %v745, %v828
    %v830 = vpop.f32.mrb[0].mxu0
    %v831 = vadd.f32 %v749, %v830
    %832 = vdwg.mxu0
    %833 = vmatprep.subr.mxu0 %v615
    %834 = vmatpush1.msra.mxu0 %v614
    %835 = vmatprep.subr.mxu0 %v619
    %836 = vmatpush1.msra.mxu0 %v618
    %837 = vmatprep.subr.mxu0 %v623
    %838 = vmatpush1.msra.mxu0 %v622
    %839 = vmatprep.subr.mxu0 %v627
    %840 = vmatpush1.msra.mxu0 %v626
    %841 = vmatprep.subr.mxu0 %v631
    %842 = vmatpush1.msra.mxu0 %v630
    %843 = vmatprep.subr.mxu0 %v635
    %844 = vmatpush1.msra.mxu0 %v634
    %845 = vmatprep.subr.mxu0 %v639
    %846 = vmatpush1.msra.mxu0 %v638
    %847 = vmatprep.subr.mxu0 %v643
    %848 = vmatpush1.msra.mxu0 %v642
    %849 = vmatprep.subr.mxu0 %v647
    %850 = vmatpush1.msra.mxu0 %v646
    %851 = vmatprep.subr.mxu0 %v651
    %852 = vmatpush1.msra.mxu0 %v650
    %853 = vmatprep.subr.mxu0 %v655
    %854 = vmatpush1.msra.mxu0 %v654
    %855 = vmatprep.subr.mxu0 %v659
    %856 = vmatpush1.msra.mxu0 %v658
    %857 = vmatprep.subr.mxu0 %v663
    %858 = vmatpush1.msra.mxu0 %v662
    %859 = vmatprep.subr.mxu0 %v667
    %860 = vmatpush1.msra.mxu0 %v666
    %861 = vmatprep.subr.mxu0 %v671
    %862 = vmatpush1.msra.mxu0 %v670
    %863 = vmatprep.subr.mxu0 %v675
    %864 = vmatpush1.msra.mxu0 %v674
    %865 = vmatprep.subr.mxu0 %v679
    %866 = vmatpush1.msra.mxu0 %v678
    %867 = vmatprep.subr.mxu0 %v683
    %868 = vmatpush1.msra.mxu0 %v682
    %869 = vmatprep.subr.mxu0 %v687
    %870 = vmatpush1.msra.mxu0 %v686
    %871 = vmatprep.subr.mxu0 %v691
    %872 = vmatpush1.msra.mxu0 %v690
    %873 = vmatprep.subr.mxu0 %v695
    %874 = vmatpush1.msra.mxu0 %v694
    %875 = vmatprep.subr.mxu0 %v699
    %876 = vmatpush1.msra.mxu0 %v698
    %877 = vmatprep.subr.mxu0 %v703
    %878 = vmatpush1.msra.mxu0 %v702
    %879 = vmatprep.subr.mxu0 %v707
    %880 = vmatpush1.msra.mxu0 %v706
    %881 = vmatprep.subr.mxu0 %v711
    %882 = vmatpush1.msra.mxu0 %v710
    %883 = vmatprep.subr.mxu0 %v715
    %884 = vmatpush1.msra.mxu0 %v714
    %885 = vmatprep.subr.mxu0 %v719
    %886 = vmatpush1.msra.mxu0 %v718
    %887 = vmatprep.subr.mxu0 %v723
    %888 = vmatpush1.msra.mxu0 %v722
    %889 = vmatprep.subr.mxu0 %v727
    %890 = vmatpush1.msra.mxu0 %v726
    %891 = vmatprep.subr.mxu0 %v731
    %892 = vmatpush1.msra.mxu0 %v730
    %893 = vmatprep.subr.mxu0 %v735
    %894 = vmatpush1.msra.mxu0 %v734
    %895 = vmatprep.subr.mxu0 %v739
    %896 = vmatpush1.msra.mxu0 %v738
    %897 = vmatprep.mubr.f32.mxu0 %v611
    %898 = vmatmul.mubr.f32.gmra.mrb[0].mxu0 %v610
    %v899 = vpop.f32.mrb[0].mxu0
    %v900 = vadd.f32 %v753, %v899
    %v901 = vpop.f32.mrb[0].mxu0
    %v902 = vadd.f32 %v757, %v901
    %903 = vdwg.mxu0
    %v904 = vxor.u32 %v829, 2147483648
    %v905 = vxor.u32 %v831, 2147483648
    %v906 = vxor.u32 %v900, 2147483648
    %v907 = vxor.u32 %v902, 2147483648
    %v908 = vmul.f32 %v904, 1.442695
    %v909 = vpow.pop %v908
    %v910 = vmul.f32 %v905, 1.442695
    %v911 = vpow.pop %v910
    %v912 = vmul.f32 %v906, 1.442695
    %v913 = vpow.pop %v912
    %v914 = vmul.f32 %v907, 1.442695
    %v915 = vpow.pop %v914
    %v916 = vadd.f32 %v909, 1.0
    %v917 = vadd.f32 %v911, 1.0
    %v918 = vadd.f32 %v913, 1.0
    %v919 = vadd.f32 %v915, 1.0
    %v920 = vrcp.pop %v916
    %v921 = vmul.f32 1.0, %v920
    %v922 = vrcp.pop %v917
    %v923 = vmul.f32 1.0, %v922
    %v924 = vrcp.pop %v918
    %v925 = vmul.f32 1.0, %v924
    %v926 = vrcp.pop %v919
    %v927 = vmul.f32 1.0, %v926
    %v928 = vmul.f32 %v177, %v921
    %929 = vst [vmem:[#allocation20] sm:$0xff] %v928
    %930 = vst [vmem:[#allocation20 + $0x8] sm:$0xff] %v921
    %v931 = vmul.f32 %v178, %v923
    %932 = vst [vmem:[#allocation20 + $0x10] sm:$0xff] %v931
    %933 = vst [vmem:[#allocation20 + $0x18] sm:$0xff] %v923
    %v934 = vmul.f32 %v178, %v925
    %935 = vst [vmem:[#allocation20 + $0x20] sm:$0xff] %v934
    %936 = vst [vmem:[#allocation20 + $0x28] sm:$0xff] %v925
    %v937 = vmul.f32 %v176, %v927
    %938 = vst [vmem:[#allocation20 + $0x30] sm:$0xff] %v937
    // Predicated region
    $region90: #{mmtm_quad_forward.1} parent=1 // pred_check
      _
    $region91: #{mmtm_quad_forward.1} parent=1 // pred_check_branch
      %940 = sbr.rel (0) target = $region93
    $region92: #{mmtm_quad_forward.1} parent=1 // pred_region
      %s942 = ssub.s32 896, 896
      %943 = vsyncadd [#allocation4], %s942
      %s945 = sshll.u32 [#allocation20], 4
      %s946 = int_to_ptr.vmem [resolvable:$true] %s945
      %948 = dma.vmem_to_hbm [thread:$0]  %s946, 896, %s11, [#allocation4]
    $region93: #{mmtm_quad_forward.1} parent=1 // pred_fallthru
      _
    // Predicated region
    $region94: #{mmtm_quad_forward.1} parent=1 // pred_check
      _
    $region95: #{mmtm_quad_forward.1} parent=1 // pred_check_branch
      %950 = sbr.rel (0) target = $region97
    $region96: #{mmtm_quad_forward.1} parent=1 // pred_region
      %951 = dma.done [#allocation4], 896
    $region97: #{mmtm_quad_forward.1} parent=1 // pred_fallthru
      _
    %952 = vsyncpa [#allocation3], 1
    %953 = vsyncpa [#allocation6], 1
    %954 = vsyncpa [#allocation9], 1
    %955 = vsyncpa [#allocation12], 1
    %956 = vsyncpa [#allocation15], 1
    %957 = vsyncpa [#allocation18], 1
    %958 = vsyncpa [#allocation4], 1

</llo_original>
